<compile_context>
chip_gen: v7x
topology: tpu7x:2x2x1
jax: 0.10.0
libtpu: 0.0.40
codegen_flags: <defaults>
</compile_context>

<pallas_src>
import jax
import jax.numpy as jnp
from jax.experimental import pallas as pl
from jax.experimental.pallas import tpu as pltpu


def _pick_channel_block(C, HW, n_batch, target_bytes=1 << 20):
    """Largest channel block that divides C, keeps one input block <= ~1 MiB,
    respects the (8, 128) block-layout rule, and leaves >= 2 grid steps."""
    valid = [d for d in range(1, C + 1)
             if C % d == 0 and (d == C or d % 8 == 0)]
    fitting = [d for d in valid if d * HW * 4 <= target_bytes]
    cand = fitting if fitting else [min(valid)]
    cb = max(cand)
    if n_batch * (C // cb) < 2:          # feed both v7x TensorCores
        better = [d for d in cand if n_batch * (C // d) >= 2]
        if better:
            cb = max(better)
    return cb


def _make_dwise_kernel(H, W):
    HW = H * W

    def kernel(x_ref, w_ref, b_ref, o_ref):
        # x_ref: (1, Cb, HW)  one batch x Cb channels, plane flattened on lanes
        # w_ref: (9, Cb, 1)   tap-major weights, k = (dh+1)*3 + (dw+1)
        # b_ref: (Cb, 1)      bias
        # o_ref: (1, Cb, HW)
        x = x_ref[0].astype(jnp.float32)                      # (Cb, HW)
        b = b_ref[...].astype(jnp.float32)                    # (Cb, 1)

        # Channel-invariant edge masks: computed ONCE per block on a single
        # (1, HW) row, reused by every channel and every tap.
        pos = jax.lax.broadcasted_iota(jnp.int32, (1, HW), 1)
        col = pos % W
        not_left = col >= 1                                   # j-1 in range
        not_right = col <= W - 2                              # j+1 in range
        not_top = pos >= W                                    # i-1 in range
        not_bottom = pos <= HW - W - 1                        # i+1 in range

        # Column taps: one lane-axis rotation each (XLU slot), shared by all
        # three row taps and all Cb channels in the block.
        x_l = jnp.where(not_left, pltpu.roll(x, 1, axis=1), 0.0)        # x[p-1]
        x_r = jnp.where(not_right, pltpu.roll(x, HW - 1, axis=1), 0.0)  # x[p+1]

        def row_sum(dh):
            k = (dh + 1) * 3
            wl = w_ref[k].astype(jnp.float32)      # (Cb, 1): lane-broadcast
            wc = w_ref[k + 1].astype(jnp.float32)
            wr = w_ref[k + 2].astype(jnp.float32)
            return wl * x_l + wc * x + wr * x_r

        acc = b + row_sum(0)                       # bias folded into the init
        if H > 1:
            # out[p] needs row_sum(-1) from the row above / row_sum(+1) from
            # the row below: +-W lane rotations, zeroed at the H edges.
            acc = acc + jnp.where(not_top,
                                  pltpu.roll(row_sum(-1), W, axis=1), 0.0)
            acc = acc + jnp.where(not_bottom,
                                  pltpu.roll(row_sum(1), HW - W, axis=1), 0.0)

        o_ref[0] = acc.astype(o_ref.dtype)

    return kernel


@jax.jit
def dwise_forward(x_nchw, weight, bias):
    """Depthwise conv2d, kernel=3, stride=1, padding=1, groups=C.

    x_nchw : (N, C, H, W) float32
    weight : (C, 1, 3, 3) float32  (PyTorch depthwise layout)
    bias   : (C,)         float32
    returns (N, C, H, W)
    """
    N, C, H, W = x_nchw.shape
    HW = H * W

    # Free reshape (contiguous): keeps NCHW order, lane-dense H*W slab last.
    x_flat = x_nchw.reshape(N, C, HW)
    # Tap-major weights: w9[k, c, 0] = weight[c, 0, k//3, k%3].
    w9 = jnp.asarray(weight, jnp.float32).reshape(C, 9).T.reshape(9, C, 1)
    b2 = jnp.asarray(bias, jnp.float32).reshape(C, 1)

    Cb = _pick_channel_block(C, HW, N)
    grid = (N, C // Cb)

    out_flat = pl.pallas_call(
        _make_dwise_kernel(H, W),
        out_shape=jax.ShapeDtypeStruct((N, C, HW), x_nchw.dtype),
        grid=grid,
        in_specs=[
            pl.BlockSpec((1, Cb, HW), lambda n, c: (n, c, 0)),
            pl.BlockSpec((9, Cb, 1), lambda n, c: (0, c, 0)),
            pl.BlockSpec((Cb, 1), lambda n, c: (c, 0)),
        ],
        out_specs=pl.BlockSpec((1, Cb, HW), lambda n, c: (n, c, 0)),
        compiler_params=pltpu.CompilerParams(
            dimension_semantics=("parallel", "parallel"),
            vmem_limit_bytes=32 * 1024 * 1024,   # keep <= 32 MiB for v7x headroom
        ),
    )(x_flat, w9, b2)

    return out_flat.reshape(N, C, H, W)


if __name__ == "__main__":
    key = jax.random.PRNGKey(0)
    k_x, k_w, k_b = jax.random.split(key, 3)

    N, C, H, W = 2, 4, 16, 16
    x = jax.random.normal(k_x, (N, C, H, W), dtype=jnp.float32)
    # Deterministic synthetic parameters (shapes match nn.Conv2d(C, C, 3, groups=C)).
    weight = jax.random.normal(k_w, (C, 1, 3, 3), dtype=jnp.float32) * 0.1
    bias = jax.random.normal(k_b, (C,), dtype=jnp.float32) * 0.1

    out = dwise_forward(x, weight, bias)
    out = jax.block_until_ready(out)

    # Reference: XLA grouped convolution (matches PyTorch depthwise semantics).
    ref = jax.lax.conv_general_dilated(
        x, weight,
        window_strides=(1, 1),
        padding=((1, 1), (1, 1)),
        dimension_numbers=("NCHW", "OIHW", "NCHW"),
        feature_group_count=C,
    ) + bias.reshape(1, C, 1, 1)

    assert out.shape == (N, C, H, W)
    assert jnp.allclose(out, ref, atol=1e-5, rtol=1e-5)
    print("KERNEL_OK")
</pallas_src>

<mosaic_0001>
module attributes {stable_mosaic.version = 11 : i64} {
  func.func @kernel(%arg0: i32, %arg1: i32, %arg2: memref<1x4x256xf32, #tpu.memory_space<vmem>>, %arg3: memref<9x4x1xf32, #tpu.memory_space<vmem>>, %arg4: memref<4x1xf32, #tpu.memory_space<vmem>>, %arg5: memref<1x4x256xf32, #tpu.memory_space<vmem>>) attributes {dimension_semantics = [#tpu.dimension_semantics<parallel>, #tpu.dimension_semantics<parallel>], iteration_bounds = array<i64: 2, 1>, scalar_prefetch = 0 : i64, scratch_operands = 0 : i64, tpu.core_type = #tpu.core_type<tc>, window_params = [{transform_indices = @transform_0, window_bounds = array<i64: 1, 4, 256>}, {transform_indices = @transform_1, window_bounds = array<i64: 9, 4, 1>}, {transform_indices = @transform_2, window_bounds = array<i64: 4, 1>}, {transform_indices = @transform_3, window_bounds = array<i64: 1, 4, 256>}]} {
    %c0 = arith.constant 0 : index
    %c0_0 = arith.constant 0 : index
    %c0_1 = arith.constant 0 : index
    %0 = vector.load %arg2[%c0, %c0_0, %c0_1] : memref<1x4x256xf32, #tpu.memory_space<vmem>>, vector<1x4x256xf32>
    %1 = vector.shape_cast %0 : vector<1x4x256xf32> to vector<4x256xf32>
    %c0_2 = arith.constant 0 : index
    %c0_3 = arith.constant 0 : index
    %2 = vector.load %arg4[%c0_2, %c0_3] : memref<4x1xf32, #tpu.memory_space<vmem>>, vector<4x1xf32>
    %3 = tpu.iota {dimensions = array<i32: 1>} : vector<1x256xi32>
    %c16_i32 = arith.constant 16 : i32
    %c0_i32 = arith.constant 0 : i32
    %4 = arith.cmpi eq, %c16_i32, %c0_i32 : i32
    %c1_i32 = arith.constant 1 : i32
    %5 = arith.select %4, %c1_i32, %c16_i32 : i32
    %6 = vector.broadcast %5 : i32 to vector<1x256xi32>
    %7 = arith.remsi %3, %6 : vector<1x256xi32>
    %c0_i32_4 = arith.constant 0 : i32
    %8 = vector.broadcast %c0_i32_4 : i32 to vector<1x256xi32>
    %9 = arith.cmpi ne, %7, %8 : vector<1x256xi32>
    %c0_i32_5 = arith.constant 0 : i32
    %10 = vector.broadcast %c0_i32_5 : i32 to vector<1x256xi32>
    %11 = arith.cmpi slt, %7, %10 : vector<1x256xi32>
    %c0_i32_6 = arith.constant 0 : i32
    %12 = arith.cmpi slt, %5, %c0_i32_6 : i32
    %13 = vector.broadcast %12 : i1 to vector<1x256xi1>
    %14 = vector.broadcast %13 : vector<1x256xi1> to vector<1x256xi1>
    %15 = arith.xori %11, %14 : vector<1x256xi1>
    %16 = arith.andi %15, %9 : vector<1x256xi1>
    %17 = vector.broadcast %5 : i32 to vector<1x256xi32>
    %18 = arith.addi %7, %17 : vector<1x256xi32>
    %19 = arith.select %16, %18, %7 : vector<1x256xi1>, vector<1x256xi32>
    %c1_i32_7 = arith.constant 1 : i32
    %20 = vector.broadcast %c1_i32_7 : i32 to vector<1x256xi32>
    %21 = arith.cmpi sge, %19, %20 : vector<1x256xi32>
    %c14_i32 = arith.constant 14 : i32
    %22 = vector.broadcast %c14_i32 : i32 to vector<1x256xi32>
    %23 = arith.cmpi sle, %19, %22 : vector<1x256xi32>
    %c16_i32_8 = arith.constant 16 : i32
    %24 = vector.broadcast %c16_i32_8 : i32 to vector<1x256xi32>
    %25 = arith.cmpi sge, %3, %24 : vector<1x256xi32>
    %c239_i32 = arith.constant 239 : i32
    %26 = vector.broadcast %c239_i32 : i32 to vector<1x256xi32>
    %27 = arith.cmpi sle, %3, %26 : vector<1x256xi32>
    %c1_i32_9 = arith.constant 1 : i32
    %28 = tpu.dynamic_rotate %1 by %c1_i32_9 dim 1 : vector<4x256xf32>, i32 -> vector<4x256xf32>
    %cst = arith.constant 0.000000e+00 : f32
    %29 = vector.shape_cast %21 : vector<1x256xi1> to vector<1x256xi1>
    %30 = vector.broadcast %29 : vector<1x256xi1> to vector<4x256xi1>
    %31 = vector.broadcast %cst : f32 to vector<4x256xf32>
    %32 = arith.select %30, %28, %31 : vector<4x256xi1>, vector<4x256xf32>
    %c255_i32 = arith.constant 255 : i32
    %33 = tpu.dynamic_rotate %1 by %c255_i32 dim 1 : vector<4x256xf32>, i32 -> vector<4x256xf32>
    %cst_10 = arith.constant 0.000000e+00 : f32
    %34 = vector.shape_cast %23 : vector<1x256xi1> to vector<1x256xi1>
    %35 = vector.broadcast %34 : vector<1x256xi1> to vector<4x256xi1>
    %36 = vector.broadcast %cst_10 : f32 to vector<4x256xf32>
    %37 = arith.select %35, %33, %36 : vector<4x256xi1>, vector<4x256xf32>
    %c3 = arith.constant 3 : index
    %c0_11 = arith.constant 0 : index
    %c0_12 = arith.constant 0 : index
    %38 = vector.load %arg3[%c3, %c0_11, %c0_12] : memref<9x4x1xf32, #tpu.memory_space<vmem>>, vector<1x4x1xf32>
    %39 = vector.shape_cast %38 : vector<1x4x1xf32> to vector<4x1xf32>
    %c4 = arith.constant 4 : index
    %c0_13 = arith.constant 0 : index
    %c0_14 = arith.constant 0 : index
    %40 = vector.load %arg3[%c4, %c0_13, %c0_14] : memref<9x4x1xf32, #tpu.memory_space<vmem>>, vector<1x4x1xf32>
    %41 = vector.shape_cast %40 : vector<1x4x1xf32> to vector<4x1xf32>
    %c5 = arith.constant 5 : index
    %c0_15 = arith.constant 0 : index
    %c0_16 = arith.constant 0 : index
    %42 = vector.load %arg3[%c5, %c0_15, %c0_16] : memref<9x4x1xf32, #tpu.memory_space<vmem>>, vector<1x4x1xf32>
    %43 = vector.shape_cast %42 : vector<1x4x1xf32> to vector<4x1xf32>
    %44 = vector.broadcast %39 : vector<4x1xf32> to vector<4x256xf32>
    %45 = arith.mulf %44, %32 : vector<4x256xf32>
    %46 = vector.broadcast %41 : vector<4x1xf32> to vector<4x256xf32>
    %47 = arith.mulf %46, %1 : vector<4x256xf32>
    %48 = arith.addf %45, %47 : vector<4x256xf32>
    %49 = vector.broadcast %43 : vector<4x1xf32> to vector<4x256xf32>
    %50 = arith.mulf %49, %37 : vector<4x256xf32>
    %51 = arith.addf %48, %50 : vector<4x256xf32>
    %52 = vector.broadcast %2 : vector<4x1xf32> to vector<4x256xf32>
    %53 = arith.addf %52, %51 : vector<4x256xf32>
    %c0_17 = arith.constant 0 : index
    %c0_18 = arith.constant 0 : index
    %c0_19 = arith.constant 0 : index
    %54 = vector.load %arg3[%c0_17, %c0_18, %c0_19] : memref<9x4x1xf32, #tpu.memory_space<vmem>>, vector<1x4x1xf32>
    %55 = vector.shape_cast %54 : vector<1x4x1xf32> to vector<4x1xf32>
    %c1 = arith.constant 1 : index
    %c0_20 = arith.constant 0 : index
    %c0_21 = arith.constant 0 : index
    %56 = vector.load %arg3[%c1, %c0_20, %c0_21] : memref<9x4x1xf32, #tpu.memory_space<vmem>>, vector<1x4x1xf32>
    %57 = vector.shape_cast %56 : vector<1x4x1xf32> to vector<4x1xf32>
    %c2 = arith.constant 2 : index
    %c0_22 = arith.constant 0 : index
    %c0_23 = arith.constant 0 : index
    %58 = vector.load %arg3[%c2, %c0_22, %c0_23] : memref<9x4x1xf32, #tpu.memory_space<vmem>>, vector<1x4x1xf32>
    %59 = vector.shape_cast %58 : vector<1x4x1xf32> to vector<4x1xf32>
    %60 = vector.broadcast %55 : vector<4x1xf32> to vector<4x256xf32>
    %61 = arith.mulf %60, %32 : vector<4x256xf32>
    %62 = vector.broadcast %57 : vector<4x1xf32> to vector<4x256xf32>
    %63 = arith.mulf %62, %1 : vector<4x256xf32>
    %64 = arith.addf %61, %63 : vector<4x256xf32>
    %65 = vector.broadcast %59 : vector<4x1xf32> to vector<4x256xf32>
    %66 = arith.mulf %65, %37 : vector<4x256xf32>
    %67 = arith.addf %64, %66 : vector<4x256xf32>
    %c16_i32_24 = arith.constant 16 : i32
    %68 = tpu.dynamic_rotate %67 by %c16_i32_24 dim 1 : vector<4x256xf32>, i32 -> vector<4x256xf32>
    %cst_25 = arith.constant 0.000000e+00 : f32
    %69 = vector.shape_cast %25 : vector<1x256xi1> to vector<1x256xi1>
    %70 = vector.broadcast %69 : vector<1x256xi1> to vector<4x256xi1>
    %71 = vector.broadcast %cst_25 : f32 to vector<4x256xf32>
    %72 = arith.select %70, %68, %71 : vector<4x256xi1>, vector<4x256xf32>
    %73 = arith.addf %53, %72 : vector<4x256xf32>
    %c6 = arith.constant 6 : index
    %c0_26 = arith.constant 0 : index
    %c0_27 = arith.constant 0 : index
    %74 = vector.load %arg3[%c6, %c0_26, %c0_27] : memref<9x4x1xf32, #tpu.memory_space<vmem>>, vector<1x4x1xf32>
    %75 = vector.shape_cast %74 : vector<1x4x1xf32> to vector<4x1xf32>
    %c7 = arith.constant 7 : index
    %c0_28 = arith.constant 0 : index
    %c0_29 = arith.constant 0 : index
    %76 = vector.load %arg3[%c7, %c0_28, %c0_29] : memref<9x4x1xf32, #tpu.memory_space<vmem>>, vector<1x4x1xf32>
    %77 = vector.shape_cast %76 : vector<1x4x1xf32> to vector<4x1xf32>
    %c8 = arith.constant 8 : index
    %c0_30 = arith.constant 0 : index
    %c0_31 = arith.constant 0 : index
    %78 = vector.load %arg3[%c8, %c0_30, %c0_31] : memref<9x4x1xf32, #tpu.memory_space<vmem>>, vector<1x4x1xf32>
    %79 = vector.shape_cast %78 : vector<1x4x1xf32> to vector<4x1xf32>
    %80 = vector.broadcast %75 : vector<4x1xf32> to vector<4x256xf32>
    %81 = arith.mulf %80, %32 : vector<4x256xf32>
    %82 = vector.broadcast %77 : vector<4x1xf32> to vector<4x256xf32>
    %83 = arith.mulf %82, %1 : vector<4x256xf32>
    %84 = arith.addf %81, %83 : vector<4x256xf32>
    %85 = vector.broadcast %79 : vector<4x1xf32> to vector<4x256xf32>
    %86 = arith.mulf %85, %37 : vector<4x256xf32>
    %87 = arith.addf %84, %86 : vector<4x256xf32>
    %c240_i32 = arith.constant 240 : i32
    %88 = tpu.dynamic_rotate %87 by %c240_i32 dim 1 : vector<4x256xf32>, i32 -> vector<4x256xf32>
    %cst_32 = arith.constant 0.000000e+00 : f32
    %89 = vector.shape_cast %27 : vector<1x256xi1> to vector<1x256xi1>
    %90 = vector.broadcast %89 : vector<1x256xi1> to vector<4x256xi1>
    %91 = vector.broadcast %cst_32 : f32 to vector<4x256xf32>
    %92 = arith.select %90, %88, %91 : vector<4x256xi1>, vector<4x256xf32>
    %93 = arith.addf %73, %92 : vector<4x256xf32>
    %c0_33 = arith.constant 0 : index
    %c0_34 = arith.constant 0 : index
    %c0_35 = arith.constant 0 : index
    %94 = vector.load %arg5[%c0_33, %c0_34, %c0_35] : memref<1x4x256xf32, #tpu.memory_space<vmem>>, vector<1x4x256xf32>
    %95 = vector.shape_cast %94 : vector<1x4x256xf32> to vector<4x256xf32>
    %96 = vector.shape_cast %93 : vector<4x256xf32> to vector<1x4x256xf32>
    tpu.vector_store %arg5[%c0_33, %c0_34, %c0_35], %96 {strides = array<i32>} : memref<1x4x256xf32, #tpu.memory_space<vmem>>, vector<1x4x256xf32>,
    return
  }
  func.func @transform_0(%arg0: i32, %arg1: i32) -> (i32, i32, i32) {
    %c0_i32 = arith.constant 0 : i32
    %c0_i32_0 = arith.constant 0 : i32
    return %arg0, %arg1, %c0_i32 : i32, i32, i32
  }
  func.func @transform_1(%arg0: i32, %arg1: i32) -> (i32, i32, i32) {
    %c0_i32 = arith.constant 0 : i32
    %c0_i32_0 = arith.constant 0 : i32
    %c0_i32_1 = arith.constant 0 : i32
    return %c0_i32, %arg1, %c0_i32_0 : i32, i32, i32
  }
  func.func @transform_2(%arg0: i32, %arg1: i32) -> (i32, i32) {
    %c0_i32 = arith.constant 0 : i32
    %c0_i32_0 = arith.constant 0 : i32
    return %arg1, %c0_i32 : i32, i32
  }
  func.func @transform_3(%arg0: i32, %arg1: i32) -> (i32, i32, i32) {
    %c0_i32 = arith.constant 0 : i32
    %c0_i32_0 = arith.constant 0 : i32
    return %arg0, %arg1, %c0_i32 : i32, i32, i32
  }
}

</mosaic_0001>

<llo_original>
// kernel: dwise_forward.1
$region0: #{dwise_forward.1}
  #allocation0 [shape = 'u32[]', space=smem, size = 0x4, offset = 0x4, fixed_abs, tag = 'smem constant byte address 0x4 - core index']
  #allocation1 [shape = 'u32[144,128]{1,0:T(1,128)}', space=vmem, size = 0x12000, scoped, tag = 'internal scratch']
  %s0 = inlined_call_operand.vmem [shape: f32[2,4,256], index: 0, kind: input, shape index: {}]
  %s1 = inlined_call_operand.vmem [shape: f32[9,4,1], index: 1, kind: input, shape index: {}]
  %s2 = inlined_call_operand.vmem [shape: f32[4,1], index: 2, kind: input, shape index: {}]
  %s3 = inlined_call_operand.vmem [shape: f32[2,4,256], index: 3, kind: output, shape index: {}]
  %s4 = sld [smem:[#allocation0]]
  $region45: #{dwise_forward.1} parent=0
    _
  %s6 = ssub.s32 1, %s4
  %s7 = scalar_select 0, %s6, %s4
  loop: start=0, step=1, limit=4
  $region2: #{dwise_forward.1} parent=0 // loop_pre_header
    _
  $region3: #{dwise_forward.1} parent=0 // loop_header
    %s9 = sphi 0, %s13
    %p10 = scmp.ge.s32.totalorder %s9, 4
    %s16 = sphi 0, %s28
    %s17 = sphi 0, %s24
    %s18 = sphi 0, %s16
    %s19 = sphi 0, %s17
    %s20 = sphi 0, %s18
    %s21 = sphi 0, %s19
    %s33 = sphi 0, %s35
    %s36 = sphi 0, %s33
    %s37 = sphi 0, %s36
    %s53 = sphi 0, %s37
    %s59 = sphi 0, %s61
    %s62 = sphi 0, %s59
    %s63 = sphi 0, %s62
    %s79 = sphi 0, %s63
    %s85 = sphi 0, %s87
    %s88 = sphi 0, %s85
    %s89 = sphi 0, %s88
    %s105 = sphi 0, %s89
    %s113 = sphi 0, %s115
    %s116 = sphi 0, %s113
    %s117 = sphi 0, %s116
    %s133 = sphi 0, %s117
  $region4: #{dwise_forward.1} parent=0 // loop_header_branch
    %12 = sbr.rel (%p10) target = $region8
  $region5: #{dwise_forward.1} parent=0 // loop_body
    %s14 = ssub.s32 %s9, 1
    %s15 = ssub.s32 %s9, 2
    %s22 = sadd.s32 1, %s17
    %p23 = scmp.ge.s32.totalorder %s22, 1
    %s24 = scalar_select %p23, 0, %s22
    %s25 = sadd.s32 1, %s16
    %s26 = scalar_select %p23, %s25, %s16
    %p27 = scmp.ge.s32.totalorder %s26, 2
    %s28 = scalar_select %p27, 0, %s26
    %s29 = ssub.s32 %s16, %s28
    %s30 = ssub.s32 %s17, %s24
    %s31 = sor.u32 %s29, %s30
    %p32 = scmp.eq.s32.totalorder %s31, 0
    %s34 = sadd.s32 %s33, 1
    %s35 = scalar_select %p32, %s33, %s34
    %p38 = pneg %p32
    %p39 = scmp.eq.s32.totalorder %s9, 1
    %p40 = por %p38, %p39
    %p41 = scmp.ne.s32.totalorder %s33, %s36
    %p42 = scmp.eq.s32.totalorder %s9, 0
    %p43 = por %p41, %p42
    %p44 = scmp.ne.s32.totalorder %s33, %s36
    %p45 = scmp.eq.s32.totalorder %s14, 1
    %p46 = por %p44, %p45
    %p47 = scmp.ne.s32.totalorder %s36, %s37
    %p48 = scmp.eq.s32.totalorder %s14, 0
    %p49 = por %p47, %p48
    %p50 = scmp.ne.s32.totalorder %s36, %s37
    %p51 = scmp.eq.s32.totalorder %s15, 1
    %p52 = por %p50, %p51
    %p54 = scmp.ne.s32.totalorder %s37, %s53
    %p55 = scmp.eq.s32.totalorder %s15, 0
    %p56 = por %p54, %p55
    %s57 = ssub.s32 %s17, %s24
    %p58 = scmp.eq.s32.totalorder %s57, 0
    %s60 = sadd.s32 %s59, 1
    %s61 = scalar_select %p58, %s59, %s60
    %p64 = pneg %p58
    %p65 = scmp.eq.s32.totalorder %s9, 1
    %p66 = por %p64, %p65
    %p67 = scmp.ne.s32.totalorder %s59, %s62
    %p68 = scmp.eq.s32.totalorder %s9, 0
    %p69 = por %p67, %p68
    %p70 = scmp.ne.s32.totalorder %s59, %s62
    %p71 = scmp.eq.s32.totalorder %s14, 1
    %p72 = por %p70, %p71
    %p73 = scmp.ne.s32.totalorder %s62, %s63
    %p74 = scmp.eq.s32.totalorder %s14, 0
    %p75 = por %p73, %p74
    %p76 = scmp.ne.s32.totalorder %s62, %s63
    %p77 = scmp.eq.s32.totalorder %s15, 1
    %p78 = por %p76, %p77
    %p80 = scmp.ne.s32.totalorder %s63, %s79
    %p81 = scmp.eq.s32.totalorder %s15, 0
    %p82 = por %p80, %p81
    %s83 = ssub.s32 %s17, %s24
    %p84 = scmp.eq.s32.totalorder %s83, 0
    %s86 = sadd.s32 %s85, 1
    %s87 = scalar_select %p84, %s85, %s86
    %p90 = pneg %p84
    %p91 = scmp.eq.s32.totalorder %s9, 1
    %p92 = por %p90, %p91
    %p93 = scmp.ne.s32.totalorder %s85, %s88
    %p94 = scmp.eq.s32.totalorder %s9, 0
    %p95 = por %p93, %p94
    %p96 = scmp.ne.s32.totalorder %s85, %s88
    %p97 = scmp.eq.s32.totalorder %s14, 1
    %p98 = por %p96, %p97
    %p99 = scmp.ne.s32.totalorder %s88, %s89
    %p100 = scmp.eq.s32.totalorder %s14, 0
    %p101 = por %p99, %p100
    %p102 = scmp.ne.s32.totalorder %s88, %s89
    %p103 = scmp.eq.s32.totalorder %s15, 1
    %p104 = por %p102, %p103
    %p106 = scmp.ne.s32.totalorder %s89, %s105
    %p107 = scmp.eq.s32.totalorder %s15, 0
    %p108 = por %p106, %p107
    %s109 = ssub.s32 %s16, %s28
    %s110 = ssub.s32 %s17, %s24
    %s111 = sor.u32 %s109, %s110
    %p112 = scmp.eq.s32.totalorder %s111, 0
    %s114 = sadd.s32 %s113, 1
    %s115 = scalar_select %p112, %s113, %s114
    %p118 = pneg %p112
    %p119 = scmp.eq.s32.totalorder %s9, 1
    %p120 = por %p118, %p119
    %p121 = scmp.ne.s32.totalorder %s113, %s116
    %p122 = scmp.eq.s32.totalorder %s9, 0
    %p123 = por %p121, %p122
    %p124 = scmp.ne.s32.totalorder %s113, %s116
    %p125 = scmp.eq.s32.totalorder %s14, 1
    %p126 = por %p124, %p125
    %p127 = scmp.ne.s32.totalorder %s116, %s117
    %p128 = scmp.eq.s32.totalorder %s14, 0
    %p129 = por %p127, %p128
    %p130 = scmp.ne.s32.totalorder %s116, %s117
    %p131 = scmp.eq.s32.totalorder %s15, 1
    %p132 = por %p130, %p131
    %p134 = scmp.ne.s32.totalorder %s117, %s133
    %p135 = scmp.eq.s32.totalorder %s15, 0
    %p136 = por %p134, %p135
    %p137 = scmp.le.s32.totalorder 1, %s9
    %p138 = scmp.lt.s32.totalorder %s9, 3
    %p139 = pnand %p137, %p138
    %p140 = pneg %p139
    // Predicated region
    $region9: #{dwise_forward.1} parent=5 // pred_check
      _
    $region10: #{dwise_forward.1} parent=5 // pred_check_branch
      %142 = sbr.rel (%p139) target = $region12
    $region11: #{dwise_forward.1} parent=5 // pred_region
      %s143 = ssub.s32 %s9, 1
      // Predicated region
      $region13: #{dwise_forward.1} parent=11 // pred_check
        %p144 = pneg %p75
      $region14: #{dwise_forward.1} parent=11 // pred_check_branch
        %146 = sbr.rel (%p144) target = $region16
      $region15: #{dwise_forward.1} parent=11 // pred_region
        %p147 = scmp.lt.s32.totalorder %s19, 0
        %s148 = scalar_select %p147, %s19, 0
        %s149 = smul.addr %s148, 4
        %s150 = scalar_lea.vmem %s1, %s149
      $region16: #{dwise_forward.1} parent=11 // pred_fallthru
        _
      // Predicated region
      $region17: #{dwise_forward.1} parent=11 // pred_check
        %p151 = pneg %p101
      $region18: #{dwise_forward.1} parent=11 // pred_check_branch
        %153 = sbr.rel (%p151) target = $region20
      $region19: #{dwise_forward.1} parent=11 // pred_region
        %p154 = scmp.lt.s32.totalorder %s19, 0
        %s155 = scalar_select %p154, %s19, 0
        %s156 = smul.addr %s155, 4
        %s157 = scalar_lea.vmem %s2, %s156
      $region20: #{dwise_forward.1} parent=11 // pred_fallthru
        _
    $region12: #{dwise_forward.1} parent=5 // pred_fallthru
      _
    %p158 = scmp.lt.s32.totalorder %s9, 2
    // Predicated region
    $region21: #{dwise_forward.1} parent=5 // pred_check
      %p159 = pneg %p158
    $region22: #{dwise_forward.1} parent=5 // pred_check_branch
      %161 = sbr.rel (%p159) target = $region24
    $region23: #{dwise_forward.1} parent=5 // pred_region
      // Predicated region
      $region25: #{dwise_forward.1} parent=23 // pred_check
        %p162 = pneg %p43
      $region26: #{dwise_forward.1} parent=23 // pred_check_branch
        %164 = sbr.rel (%p162) target = $region28
      $region27: #{dwise_forward.1} parent=23 // pred_region
        %p165 = scmp.lt.s32.totalorder %s16, 1
        %s166 = scalar_select %p165, %s16, 1
        %p167 = scmp.lt.s32.totalorder %s17, 0
        %s168 = scalar_select %p167, %s17, 0
        %s169 = smul.addr %s168, 2
        %s170 = smul.addr %s166, 2
        %s171 = sadd.s32 %s169, %s170
        %s172 = smul.addr %s171, 4
        %s173 = scalar_lea.vmem %s0, %s172
      $region28: #{dwise_forward.1} parent=23 // pred_fallthru
        _
    $region24: #{dwise_forward.1} parent=5 // pred_fallthru
      _
    %p174 = scmp.le.s32.totalorder 1, %s9
    %p175 = scmp.lt.s32.totalorder %s9, 3
    %p176 = pnand %p174, %p175
    %p177 = pneg %p176
    // Predicated region
    $region29: #{dwise_forward.1} parent=5 // pred_check
      _
    $region30: #{dwise_forward.1} parent=5 // pred_check_branch
      %179 = sbr.rel (%p176) target = $region32
    $region31: #{dwise_forward.1} parent=5 // pred_region
      %s180 = ssub.s32 %s9, 1
      %p181 = scmp.lt.s32.totalorder %s18, 1
      %s182 = scalar_select %p181, %s18, 1
      %p183 = scmp.lt.s32.totalorder %s19, 0
      %s184 = scalar_select %p183, %s19, 0
      %s185 = smul.addr %s184, 2
      %s186 = smul.addr %s182, 2
      %s187 = sadd.s32 %s185, %s186
      %s188 = smul.addr %s187, 4
      %s189 = scalar_lea.vmem %s0, %s188
      %p190 = pneg %p49
      %p191 = pneg %p46
      %p192 = scmp.lt.s32.totalorder %s19, 0
      %s193 = scalar_select %p192, %s19, 0
      %s194 = smul.addr %s193, 4
      %s195 = scalar_lea.vmem %s1, %s194
      %p196 = pneg %p75
      %p197 = pneg %p72
      %p198 = scmp.lt.s32.totalorder %s19, 0
      %s199 = scalar_select %p198, %s19, 0
      %s200 = smul.addr %s199, 4
      %s201 = scalar_lea.vmem %s2, %s200
      %p202 = pneg %p101
      %p203 = pneg %p98
      %p204 = pneg %p129
      %p205 = pneg %p126
      %p206 = scmp.lt.s32.totalorder %s18, 1
      %s207 = scalar_select %p206, %s18, 1
      %p208 = scmp.lt.s32.totalorder %s19, 0
      %s209 = scalar_select %p208, %s19, 0
      %s210 = smul.addr %s209, 2
      %s211 = smul.addr %s207, 2
      %s212 = sadd.s32 %s210, %s211
      %s213 = smul.addr %s212, 4
      %s214 = scalar_lea.vmem %s3, %s213
      %p215 = scmp.lt.s32.totalorder %s18, 1
      %s216 = scalar_select %p215, %s18, 1
      %p217 = scmp.lt.s32.totalorder %s19, 0
      %s218 = scalar_select %p217, %s19, 0
      %s219 = smul.addr %s218, 2
      %s220 = smul.addr %s216, 2
      %s221 = sadd.s32 %s219, %s220
      %s222 = smul.addr %s221, 4
      %s223 = scalar_lea.vmem %s0, %s222
      %p224 = scmp.lt.s32.totalorder %s19, 0
      %s225 = scalar_select %p224, %s19, 0
      %s226 = smul.addr %s225, 4
      %s227 = scalar_lea.vmem %s1, %s226
      %p228 = scmp.lt.s32.totalorder %s19, 0
      %s229 = scalar_select %p228, %s19, 0
      %s230 = smul.addr %s229, 4
      %s231 = scalar_lea.vmem %s2, %s230
      %p232 = scmp.lt.s32.totalorder %s18, 1
      %s233 = scalar_select %p232, %s18, 1
      %p234 = scmp.lt.s32.totalorder %s19, 0
      %s235 = scalar_select %p234, %s19, 0
      %s236 = smul.addr %s235, 2
      %s237 = smul.addr %s233, 2
      %s238 = sadd.s32 %s236, %s237
      %s239 = smul.addr %s238, 4
      %s240 = scalar_lea.vmem %s3, %s239
      %v241 = vld [vmem:[%s223] sm:$0xff]
      %v242 = vld [vmem:[%s231] sm:$0xf]
      %v243 = vlaneseq
      %v244 = vand.u32 %v243, 127
      %v245 = vadd.s32 %v244, 128
      %vm246 = vcmp.lt.s32.totalorder %v244, 0
      %v247 = vsub.s32 0, %v244
      %v248 = vsel %vm246, %v247, %v244
      %v249 = vshrl.u32 %v248, 4
      %v250 = vand.u32 %v248, 15
      %v251 = vsub.s32 0, %v250
      %v252 = vsel %vm246, %v251, %v250
      %vm253 = vcmp.lt.s32.totalorder %v245, 0
      %v254 = vsub.s32 0, %v245
      %v255 = vsel %vm253, %v254, %v245
      %v256 = vshrl.u32 %v255, 4
      %v257 = vand.u32 %v255, 15
      %v258 = vsub.s32 0, %v257
      %v259 = vsel %vm253, %v258, %v257
      %vm260 = vcmp.ne.s32.totalorder %v252, 0
      %vm261 = vcmp.ne.s32.totalorder %v259, 0
      %vm262 = vcmp.lt.s32.totalorder %v252, 0
      %vm263 = vcmp.lt.s32.totalorder %v259, 0
      %vm264 = vmand %vm262, %vm260
      %vm265 = vmand %vm263, %vm261
      %v266 = vadd.s32 %v252, 16
      %v267 = vadd.s32 %v259, 16
      %v268 = vsel %vm264, %v266, %v252
      %v269 = vsel %vm265, %v267, %v259
      %vm270 = vcmp.ge.s32.totalorder %v268, 1
      %vm271 = vcmp.ge.s32.totalorder %v269, 1
      %vm272 = vcmp.le.s32.totalorder %v268, 14
      %vm273 = vcmp.le.s32.totalorder %v269, 14
      %vm274 = vcmp.ge.s32.totalorder %v244, 16
      %vm275 = vcmp.ge.s32.totalorder %v245, 16
      %vm276 = vcmp.le.s32.totalorder %v244, 239
      %vm277 = vcmp.le.s32.totalorder %v245, 239
      %v279 = vcombine.high %v241, %v241
      %281 = vrot.lane.b32.xlu0 %v241, 1
      %v282 = vpop.permute.xlu0 %281
      %283 = vrot.lane.b32.xlu0 %v279, 1
      %v284 = vpop.permute.xlu0 %283
      %vm285 = vcmp.lt.s32.totalorder %v244, 1
      %v286 = vsel %vm285, %v282, %v284
      %v287 = vsel %vm285, %v284, %v282
      %v288 = vsel %vm270, 1, 0
      %v289 = vsel %vm271, 1, 0
      %vm290 = vcmp.eq.s32.totalorder %v288, 1
      %vm291 = vcmp.eq.s32.totalorder %v289, 1
      %v292 = vsel %vm290, %v287, 0.0
      %v293 = vsel %vm291, %v286, 0.0
      %294 = vrot.lane.b32.xlu0 %v241, 127
      %v295 = vpop.permute.xlu0 %294
      %296 = vrot.lane.b32.xlu0 %v279, 127
      %v297 = vpop.permute.xlu0 %296
      %vm298 = vcmp.lt.s32.totalorder %v244, 127
      %v299 = vsel %vm298, %v295, %v297
      %v300 = vsel %vm298, %v297, %v295
      %v301 = vsel %vm272, 1, 0
      %v302 = vsel %vm273, 1, 0
      %vm303 = vcmp.eq.s32.totalorder %v301, 1
      %vm304 = vcmp.eq.s32.totalorder %v302, 1
      %v305 = vsel %vm303, %v299, 0.0
      %v306 = vsel %vm304, %v300, 0.0
      %s307 = scalar_lea.vmem %s227, 12
      %v308 = vld [vmem:[%s307] sm:$0xf]
      %s309 = scalar_lea.vmem %s227, 16
      %v310 = vld [vmem:[%s309] sm:$0xf]
      %s311 = scalar_lea.vmem %s227, 20
      %v312 = vld [vmem:[%s311] sm:$0xf]
      %314 = vset.pattern.permute.xlu0 0
      %315 = vperm.xlu0 %314, %v308
      %v316 = vpop.permute.xlu0 %315
      %v318 = vmul.f32 %v316, %v292
      %v319 = vmul.f32 %v316, %v293
      %321 = vset.pattern.permute.xlu0 0
      %322 = vperm.xlu0 %321, %v310
      %v323 = vpop.permute.xlu0 %322
      %v325 = vmul.f32 %v323, %v241
      %v326 = vmul.f32 %v323, %v279
      %v327 = vadd.f32 %v318, %v325
      %v328 = vadd.f32 %v319, %v326
      %330 = vset.pattern.permute.xlu0 0
      %331 = vperm.xlu0 %330, %v312
      %v332 = vpop.permute.xlu0 %331
      %v334 = vmul.f32 %v332, %v305
      %v335 = vmul.f32 %v332, %v306
      %v336 = vadd.f32 %v327, %v334
      %v337 = vadd.f32 %v328, %v335
      %339 = vset.pattern.permute.xlu0 0
      %340 = vperm.xlu0 %339, %v242
      %v341 = vpop.permute.xlu0 %340
      %v343 = vadd.f32 %v341, %v336
      %v344 = vadd.f32 %v341, %v337
      %v345 = vld [vmem:[%s227] sm:$0xf]
      %s346 = scalar_lea.vmem %s227, 4
      %v347 = vld [vmem:[%s346] sm:$0xf]
      %s348 = scalar_lea.vmem %s227, 8
      %v349 = vld [vmem:[%s348] sm:$0xf]
      %351 = vset.pattern.permute.xlu0 0
      %352 = vperm.xlu0 %351, %v345
      %v353 = vpop.permute.xlu0 %352
      %v355 = vmul.f32 %v353, %v292
      %v356 = vmul.f32 %v353, %v293
      %358 = vset.pattern.permute.xlu0 0
      %359 = vperm.xlu0 %358, %v347
      %v360 = vpop.permute.xlu0 %359
      %v362 = vmul.f32 %v360, %v241
      %v363 = vmul.f32 %v360, %v279
      %v364 = vadd.f32 %v355, %v362
      %v365 = vadd.f32 %v356, %v363
      %367 = vset.pattern.permute.xlu0 0
      %368 = vperm.xlu0 %367, %v349
      %v369 = vpop.permute.xlu0 %368
      %v371 = vmul.f32 %v369, %v305
      %v372 = vmul.f32 %v369, %v306
      %v373 = vadd.f32 %v364, %v371
      %v374 = vadd.f32 %v365, %v372
      %375 = vrot.lane.b32.xlu0 %v373, 16
      %v376 = vpop.permute.xlu0 %375
      %377 = vrot.lane.b32.xlu0 %v374, 16
      %v378 = vpop.permute.xlu0 %377
      %vm379 = vcmp.lt.s32.totalorder %v244, 16
      %v380 = vsel %vm379, %v376, %v378
      %v381 = vsel %vm379, %v378, %v376
      %v382 = vsel %vm274, 1, 0
      %v383 = vsel %vm275, 1, 0
      %vm384 = vcmp.eq.s32.totalorder %v382, 1
      %vm385 = vcmp.eq.s32.totalorder %v383, 1
      %v386 = vsel %vm384, %v381, 0.0
      %v387 = vsel %vm385, %v380, 0.0
      %v388 = vadd.f32 %v343, %v386
      %v389 = vadd.f32 %v344, %v387
      %s390 = scalar_lea.vmem %s227, 24
      %v391 = vld [vmem:[%s390] sm:$0xf]
      %s392 = scalar_lea.vmem %s227, 28
      %v393 = vld [vmem:[%s392] sm:$0xf]
      %s394 = scalar_lea.vmem %s227, 32
      %v395 = vld [vmem:[%s394] sm:$0xf]
      %397 = vset.pattern.permute.xlu0 0
      %398 = vperm.xlu0 %397, %v391
      %v399 = vpop.permute.xlu0 %398
      %v401 = vmul.f32 %v399, %v292
      %v402 = vmul.f32 %v399, %v293
      %404 = vset.pattern.permute.xlu0 0
      %405 = vperm.xlu0 %404, %v393
      %v406 = vpop.permute.xlu0 %405
      %v408 = vmul.f32 %v406, %v241
      %v409 = vmul.f32 %v406, %v279
      %v410 = vadd.f32 %v401, %v408
      %v411 = vadd.f32 %v402, %v409
      %413 = vset.pattern.permute.xlu0 0
      %414 = vperm.xlu0 %413, %v395
      %v415 = vpop.permute.xlu0 %414
      %v417 = vmul.f32 %v415, %v305
      %v418 = vmul.f32 %v415, %v306
      %v419 = vadd.f32 %v410, %v417
      %v420 = vadd.f32 %v411, %v418
      %421 = vrot.lane.b32.xlu0 %v419, 112
      %v422 = vpop.permute.xlu0 %421
      %423 = vrot.lane.b32.xlu0 %v420, 112
      %v424 = vpop.permute.xlu0 %423
      %vm425 = vcmp.lt.s32.totalorder %v244, 112
      %v426 = vsel %vm425, %v422, %v424
      %v427 = vsel %vm425, %v424, %v422
      %v428 = vsel %vm276, 1, 0
      %v429 = vsel %vm277, 1, 0
      %vm430 = vcmp.eq.s32.totalorder %v428, 1
      %vm431 = vcmp.eq.s32.totalorder %v429, 1
      %v432 = vsel %vm430, %v426, 0.0
      %v433 = vsel %vm431, %v427, 0.0
      %v434 = vadd.f32 %v388, %v432
      %v435 = vadd.f32 %v389, %v433
      %v438 = vcombine.low %v434, %v435
      %440 = vst [vmem:[%s240] sm:$0xff] %v438
      %p441 = scmp.lt.s32.totalorder %s18, 1
      %s442 = scalar_select %p441, %s18, 1
      %p443 = scmp.lt.s32.totalorder %s19, 0
      %s444 = scalar_select %p443, %s19, 0
      %s445 = smul.addr %s444, 2
      %s446 = smul.addr %s442, 2
      %s447 = sadd.s32 %s445, %s446
      %s448 = smul.addr %s447, 4
      %s449 = scalar_lea.vmem %s3, %s448
      // Predicated region
      $region33: #{dwise_forward.1} parent=31 // pred_check
        %p450 = pneg %p126
      $region34: #{dwise_forward.1} parent=31 // pred_check_branch
        %452 = sbr.rel (%p450) target = $region36
      $region35: #{dwise_forward.1} parent=31 // pred_region
        _
      $region36: #{dwise_forward.1} parent=31 // pred_fallthru
        _
    $region32: #{dwise_forward.1} parent=5 // pred_fallthru
      _
    %p453 = scmp.le.s32.totalorder 2, %s9
    // Predicated region
    $region37: #{dwise_forward.1} parent=5 // pred_check
      %p454 = pneg %p453
    $region38: #{dwise_forward.1} parent=5 // pred_check_branch
      %456 = sbr.rel (%p454) target = $region40
    $region39: #{dwise_forward.1} parent=5 // pred_region
      %s457 = ssub.s32 %s9, 2
      // Predicated region
      $region41: #{dwise_forward.1} parent=39 // pred_check
        %p458 = pneg %p132
      $region42: #{dwise_forward.1} parent=39 // pred_check_branch
        %460 = sbr.rel (%p458) target = $region44
      $region43: #{dwise_forward.1} parent=39 // pred_region
        %p461 = scmp.lt.s32.totalorder %s20, 1
        %s462 = scalar_select %p461, %s20, 1
        %p463 = scmp.lt.s32.totalorder %s21, 0
        %s464 = scalar_select %p463, %s21, 0
        %s465 = smul.addr %s464, 2
        %s466 = smul.addr %s462, 2
        %s467 = sadd.s32 %s465, %s466
        %s468 = smul.addr %s467, 4
        %s469 = scalar_lea.vmem %s3, %s468
      $region44: #{dwise_forward.1} parent=39 // pred_fallthru
        _
    $region40: #{dwise_forward.1} parent=5 // pred_fallthru
      _
  $region6: #{dwise_forward.1} parent=0 // loop_footer
    %s13 = sadd.s32 1, %s9
  $region7: #{dwise_forward.1} parent=0 // loop_footer_branch
    %8 = sbr.rel target = $region3
  $region8: #{dwise_forward.1} parent=0 // loop_exit
    _

</llo_original>
